<compile_context>
chip_gen: v7x
topology: tpu7x:2x2x1
jax: 0.10.0
libtpu: 0.0.40
codegen_flags: <defaults>
</compile_context>

<pallas_src>
import jax
import jax.numpy as jnp
from jax.experimental import pallas as pl
from jax.experimental.pallas import tpu as pltpu

D_IN, D_H1, D_H2, D_OUT = 140, 80, 40, 10


def _round_up(n, m):
    return ((n + m - 1) // m) * m


def classifier_kernel(x_ref, w1_ref, b1_ref, w2_ref, b2_ref, w3_ref, b3_ref,
                      o_ref):
    # Single-pass MXU: bf16 operands, f32 accumulation.
    x = x_ref[...].astype(jnp.bfloat16)                 # (TB, 140)

    # fc1 + ReLU
    h1 = jnp.dot(x, w1_ref[...],
                 preferred_element_type=jnp.float32) + b1_ref[...]
    h1 = jnp.maximum(h1, 0.0).astype(jnp.bfloat16)      # (TB, 80)

    # fc2 + ReLU
    h2 = jnp.dot(h1, w2_ref[...],
                 preferred_element_type=jnp.float32) + b2_ref[...]
    h2 = jnp.maximum(h2, 0.0).astype(jnp.bfloat16)      # (TB, 40)

    # fc3 (logits), f32
    logits = jnp.dot(h2, w3_ref[...],
                     preferred_element_type=jnp.float32) + b3_ref[...]  # (TB, 10)

    # log_softmax over last dim (numerically stable, f32).
    # exp/log -> EUP, max/sum -> XLU: separate VLIW slots from MXU/VPU, so
    # this overlaps the matmul pipeline essentially for free.
    m = jnp.max(logits, axis=-1, keepdims=True)
    shifted = logits - m
    lse = jnp.log(jnp.sum(jnp.exp(shifted), axis=-1, keepdims=True))
    o_ref[...] = (shifted - lse).astype(o_ref.dtype)


def classifier_forward(x, params, *, block_b=4096):
    """x: (B, 140) float32. params: dict of transposed weights + biases.

    block_b: max batch-tile rows (multiple of 8).  4096 rows keeps the
    double-buffered x tile + f32 temporaries around ~25 MB of VMEM, which
    fits the scoped default on v5e/v6e and the tighter 64 MiB of v7x.
    """
    B = x.shape[0]
    # Resident weights pre-cast to bf16 (single-pass MXU); biases stay f32.
    w1t = params["w1t"].astype(jnp.bfloat16)
    w2t = params["w2t"].astype(jnp.bfloat16)
    w3t = params["w3t"].astype(jnp.bfloat16)
    b1, b2, b3 = params["b1"], params["b2"], params["b3"]

    # Pick the batch tile.
    b8 = _round_up(B, 8)
    block_b = _round_up(max(block_b, 8), 8)
    if b8 <= block_b:
        # Whole batch fits in one tile: if it is big enough to be worth
        # splitting, use 2 grid steps so v7x's two TensorCores both get work.
        if b8 >= 512:
            tb = _round_up((b8 + 1) // 2, 8)
        else:
            tb = b8
    else:
        tb = block_b
    b_pad = _round_up(B, tb)
    if b_pad != B:
        x = jnp.pad(x, ((0, b_pad - B), (0, 0)))
    grid = (b_pad // tb,)

    # x / out are tiled over the batch; the six params use a constant block
    # index so they are DMA'd once and remain VMEM-resident for every step.
    x_spec = pl.BlockSpec((tb, D_IN), lambda i: (i, 0))
    o_spec = pl.BlockSpec((tb, D_OUT), lambda i: (i, 0))
    w1_spec = pl.BlockSpec((D_IN, D_H1), lambda i: (0, 0))
    b1_spec = pl.BlockSpec((1, D_H1), lambda i: (0, 0))
    w2_spec = pl.BlockSpec((D_H1, D_H2), lambda i: (0, 0))
    b2_spec = pl.BlockSpec((1, D_H2), lambda i: (0, 0))
    w3_spec = pl.BlockSpec((D_H2, D_OUT), lambda i: (0, 0))
    b3_spec = pl.BlockSpec((1, D_OUT), lambda i: (0, 0))

    # VMEM budget: x tile lane-padded 140->256 f32 (1 KB/row) + out padded to
    # 128 lanes (0.5 KB/row), double-buffered, plus ~3 KB/row of f32/bf16
    # temporaries -> ~6 KB/row, plus small resident weights.
    vmem_needed = tb * 6 * 1024 + (2 << 20)
    vmem_limit = int(min(max(vmem_needed, 32 << 20), 100 << 20))

    param_bytes = sum(int(p.size) * p.dtype.itemsize
                      for p in (w1t, b1, w2t, b2, w3t, b3))
    cost = pl.CostEstimate(
        flops=2 * b_pad * (D_IN * D_H1 + D_H1 * D_H2 + D_H2 * D_OUT),
        transcendentals=b_pad * (D_OUT + 1),            # exp per logit + log
        bytes_accessed=b_pad * (D_IN + D_OUT) * 4 + param_bytes,
    )

    out = pl.pallas_call(
        classifier_kernel,
        out_shape=jax.ShapeDtypeStruct((b_pad, D_OUT), jnp.float32),
        grid=grid,
        in_specs=[x_spec, w1_spec, b1_spec, w2_spec, b2_spec, w3_spec, b3_spec],
        out_specs=o_spec,
        compiler_params=pltpu.CompilerParams(
            dimension_semantics=("parallel",),
            vmem_limit_bytes=vmem_limit),
        cost_estimate=cost,
    )(x, w1t, b1, w2t, b2, w3t, b3)

    return out[:B] if b_pad != B else out


def init_params(key):
    """Deterministic synthetic init (PyTorch-Linear-style uniform bounds)."""
    def linear(key, fan_in, fan_out):
        kw, kb = jax.random.split(key)
        bound = 1.0 / jnp.sqrt(float(fan_in))
        # stored already transposed: (in, out)
        w_t = jax.random.uniform(kw, (fan_in, fan_out), jnp.float32,
                                 minval=-bound, maxval=bound)
        b = jax.random.uniform(kb, (1, fan_out), jnp.float32,
                               minval=-bound, maxval=bound)
        return w_t, b

    k1, k2, k3 = jax.random.split(key, 3)
    w1t, b1 = linear(k1, D_IN, D_H1)
    w2t, b2 = linear(k2, D_H1, D_H2)
    w3t, b3 = linear(k3, D_H2, D_OUT)
    return dict(w1t=w1t, b1=b1, w2t=w2t, b2=b2, w3t=w3t, b3=b3)


def reference_forward_f32(x, p):
    """Pure-f32 reference (matches the PyTorch module semantics)."""
    h1 = jnp.maximum(x @ p["w1t"] + p["b1"], 0.0)
    h2 = jnp.maximum(h1 @ p["w2t"] + p["b2"], 0.0)
    logits = h2 @ p["w3t"] + p["b3"]
    return jax.nn.log_softmax(logits, axis=-1)


def reference_forward_bf16(x, p):
    """Reference with the same bf16-operand / f32-accumulate matmuls."""
    w1 = p["w1t"].astype(jnp.bfloat16)
    w2 = p["w2t"].astype(jnp.bfloat16)
    w3 = p["w3t"].astype(jnp.bfloat16)
    h1 = jnp.dot(x.astype(jnp.bfloat16), w1,
                 preferred_element_type=jnp.float32) + p["b1"]
    h1 = jnp.maximum(h1, 0.0).astype(jnp.bfloat16)
    h2 = jnp.dot(h1, w2, preferred_element_type=jnp.float32) + p["b2"]
    h2 = jnp.maximum(h2, 0.0).astype(jnp.bfloat16)
    logits = jnp.dot(h2, w3, preferred_element_type=jnp.float32) + p["b3"]
    return jax.nn.log_softmax(logits, axis=-1)


if __name__ == "__main__":
    key = jax.random.PRNGKey(0)
    kx, kp, kx2, kx3 = jax.random.split(key, 4)
    params = init_params(kp)

    # Small batch: single grid step.
    B = 8
    x = jax.random.normal(kx, (B, D_IN), dtype=jnp.float32)
    out = jax.block_until_ready(classifier_forward(x, params))
    assert out.shape == (B, D_OUT)
    assert jnp.allclose(out, reference_forward_bf16(x, params),
                        atol=1e-3, rtol=1e-3)
    # Sanity vs the pure-f32 PyTorch-equivalent reference (bf16 matmul tol).
    assert jnp.allclose(out, reference_forward_f32(x, params),
                        atol=5e-2, rtol=5e-2)

    # Ragged batch with a small tile: exercises the multi-step grid + padding.
    B2 = 200
    x2 = jax.random.normal(kx2, (B2, D_IN), dtype=jnp.float32)
    out2 = jax.block_until_ready(classifier_forward(x2, params, block_b=64))
    assert out2.shape == (B2, D_OUT)
    assert jnp.allclose(out2, reference_forward_bf16(x2, params),
                        atol=1e-3, rtol=1e-3)

    # Mid-size batch with default tile: exercises the 2-step megacore split.
    B3 = 600
    x3 = jax.random.normal(kx3, (B3, D_IN), dtype=jnp.float32)
    out3 = jax.block_until_ready(classifier_forward(x3, params))
    assert out3.shape == (B3, D_OUT)
    assert jnp.allclose(out3, reference_forward_bf16(x3, params),
                        atol=1e-3, rtol=1e-3)

    print("KERNEL_OK")
</pallas_src>

<mosaic_0001>
module attributes {stable_mosaic.version = 11 : i64} {
  func.func @classifier_kernel(%arg0: i32, %arg1: memref<8x140xf32, #tpu.memory_space<vmem>>, %arg2: memref<140x80xbf16, #tpu.memory_space<vmem>>, %arg3: memref<1x80xf32, #tpu.memory_space<vmem>>, %arg4: memref<80x40xbf16, #tpu.memory_space<vmem>>, %arg5: memref<1x40xf32, #tpu.memory_space<vmem>>, %arg6: memref<40x10xbf16, #tpu.memory_space<vmem>>, %arg7: memref<1x10xf32, #tpu.memory_space<vmem>>, %arg8: memref<8x10xf32, #tpu.memory_space<vmem>>) attributes {dimension_semantics = [#tpu.dimension_semantics<parallel>], iteration_bounds = array<i64: 1>, scalar_prefetch = 0 : i64, scratch_operands = 0 : i64, tpu.core_type = #tpu.core_type<tc>, window_params = [{transform_indices = @transform_0, window_bounds = array<i64: 8, 140>}, {pipeline_mode = #tpu.pipeline_mode<synchronous>, transform_indices = @transform_1, window_bounds = array<i64: 140, 80>}, {pipeline_mode = #tpu.pipeline_mode<synchronous>, transform_indices = @transform_2, window_bounds = array<i64: 1, 80>}, {pipeline_mode = #tpu.pipeline_mode<synchronous>, transform_indices = @transform_3, window_bounds = array<i64: 80, 40>}, {pipeline_mode = #tpu.pipeline_mode<synchronous>, transform_indices = @transform_4, window_bounds = array<i64: 1, 40>}, {pipeline_mode = #tpu.pipeline_mode<synchronous>, transform_indices = @transform_5, window_bounds = array<i64: 40, 10>}, {pipeline_mode = #tpu.pipeline_mode<synchronous>, transform_indices = @transform_6, window_bounds = array<i64: 1, 10>}, {transform_indices = @transform_7, window_bounds = array<i64: 8, 10>}]} {
    %c0 = arith.constant 0 : index
    %c0_0 = arith.constant 0 : index
    %0 = vector.load %arg1[%c0, %c0_0] : memref<8x140xf32, #tpu.memory_space<vmem>>, vector<8x140xf32>
    %1 = arith.truncf %0 : vector<8x140xf32> to vector<8x140xbf16>
    %c0_1 = arith.constant 0 : index
    %c0_2 = arith.constant 0 : index
    %2 = vector.load %arg2[%c0_1, %c0_2] : memref<140x80xbf16, #tpu.memory_space<vmem>>, vector<140x80xbf16>
    %cst = arith.constant dense<0.000000e+00> : vector<8x80xf32>
    %3 = tpu.matmul %1, %2, %cst {dimension_numbers = #tpu.dot_dimension_numbers<[1], [0], [0], [1], [0, 0, 1, 1], [], []>} : vector<8x140xbf16>, vector<140x80xbf16>, vector<8x80xf32> -> vector<8x80xf32>
    %c0_3 = arith.constant 0 : index
    %c0_4 = arith.constant 0 : index
    %4 = vector.load %arg3[%c0_3, %c0_4] : memref<1x80xf32, #tpu.memory_space<vmem>>, vector<1x80xf32>
    %5 = vector.broadcast %4 : vector<1x80xf32> to vector<8x80xf32>
    %6 = arith.addf %3, %5 : vector<8x80xf32>
    %cst_5 = arith.constant 0.000000e+00 : f32
    %7 = vector.broadcast %cst_5 : f32 to vector<8x80xf32>
    %8 = arith.maximumf %6, %7 : vector<8x80xf32>
    %9 = arith.truncf %8 : vector<8x80xf32> to vector<8x80xbf16>
    %c0_6 = arith.constant 0 : index
    %c0_7 = arith.constant 0 : index
    %10 = vector.load %arg4[%c0_6, %c0_7] : memref<80x40xbf16, #tpu.memory_space<vmem>>, vector<80x40xbf16>
    %cst_8 = arith.constant dense<0.000000e+00> : vector<8x40xf32>
    %11 = tpu.matmul %9, %10, %cst_8 {dimension_numbers = #tpu.dot_dimension_numbers<[1], [0], [0], [1], [0, 0, 1, 1], [], []>} : vector<8x80xbf16>, vector<80x40xbf16>, vector<8x40xf32> -> vector<8x40xf32>
    %c0_9 = arith.constant 0 : index
    %c0_10 = arith.constant 0 : index
    %12 = vector.load %arg5[%c0_9, %c0_10] : memref<1x40xf32, #tpu.memory_space<vmem>>, vector<1x40xf32>
    %13 = vector.broadcast %12 : vector<1x40xf32> to vector<8x40xf32>
    %14 = arith.addf %11, %13 : vector<8x40xf32>
    %cst_11 = arith.constant 0.000000e+00 : f32
    %15 = vector.broadcast %cst_11 : f32 to vector<8x40xf32>
    %16 = arith.maximumf %14, %15 : vector<8x40xf32>
    %17 = arith.truncf %16 : vector<8x40xf32> to vector<8x40xbf16>
    %c0_12 = arith.constant 0 : index
    %c0_13 = arith.constant 0 : index
    %18 = vector.load %arg6[%c0_12, %c0_13] : memref<40x10xbf16, #tpu.memory_space<vmem>>, vector<40x10xbf16>
    %cst_14 = arith.constant dense<0.000000e+00> : vector<8x10xf32>
    %19 = tpu.matmul %17, %18, %cst_14 {dimension_numbers = #tpu.dot_dimension_numbers<[1], [0], [0], [1], [0, 0, 1, 1], [], []>} : vector<8x40xbf16>, vector<40x10xbf16>, vector<8x10xf32> -> vector<8x10xf32>
    %c0_15 = arith.constant 0 : index
    %c0_16 = arith.constant 0 : index
    %20 = vector.load %arg7[%c0_15, %c0_16] : memref<1x10xf32, #tpu.memory_space<vmem>>, vector<1x10xf32>
    %21 = vector.broadcast %20 : vector<1x10xf32> to vector<8x10xf32>
    %22 = arith.addf %19, %21 : vector<8x10xf32>
    %cst_17 = arith.constant dense<0xFF800000> : vector<8xf32>
    %23 = vector.multi_reduction <maximumf>, %22, %cst_17 [1] : vector<8x10xf32> to vector<8xf32>
    %24 = vector.shape_cast %23 : vector<8xf32> to vector<8x1xf32>
    %25 = vector.broadcast %24 : vector<8x1xf32> to vector<8x10xf32>
    %26 = arith.subf %22, %25 : vector<8x10xf32>
    %27 = math.exp %26 : vector<8x10xf32>
    %cst_18 = arith.constant dense<0.000000e+00> : vector<8xf32>
    %28 = vector.multi_reduction <add>, %27, %cst_18 [1] : vector<8x10xf32> to vector<8xf32>
    %29 = vector.shape_cast %28 : vector<8xf32> to vector<8x1xf32>
    %30 = math.log %29 : vector<8x1xf32>
    %31 = vector.broadcast %30 : vector<8x1xf32> to vector<8x10xf32>
    %32 = arith.subf %26, %31 : vector<8x10xf32>
    %c0_19 = arith.constant 0 : index
    %c0_20 = arith.constant 0 : index
    %33 = vector.load %arg8[%c0_19, %c0_20] : memref<8x10xf32, #tpu.memory_space<vmem>>, vector<8x10xf32>
    tpu.vector_store %arg8[%c0_19, %c0_20], %32 {strides = array<i32>} : memref<8x10xf32, #tpu.memory_space<vmem>>, vector<8x10xf32>,
    return
  }
  func.func @transform_0(%arg0: i32) -> (i32, i32) {
    %c0_i32 = arith.constant 0 : i32
    %c0_i32_0 = arith.constant 0 : i32
    return %arg0, %c0_i32 : i32, i32
  }
  func.func @transform_1(%arg0: i32) -> (i32, i32) {
    %c0_i32 = arith.constant 0 : i32
    %c0_i32_0 = arith.constant 0 : i32
    %c0_i32_1 = arith.constant 0 : i32
    return %c0_i32, %c0_i32_0 : i32, i32
  }
  func.func @transform_2(%arg0: i32) -> (i32, i32) {
    %c0_i32 = arith.constant 0 : i32
    %c0_i32_0 = arith.constant 0 : i32
    %c0_i32_1 = arith.constant 0 : i32
    return %c0_i32, %c0_i32_0 : i32, i32
  }
  func.func @transform_3(%arg0: i32) -> (i32, i32) {
    %c0_i32 = arith.constant 0 : i32
    %c0_i32_0 = arith.constant 0 : i32
    %c0_i32_1 = arith.constant 0 : i32
    return %c0_i32, %c0_i32_0 : i32, i32
  }
  func.func @transform_4(%arg0: i32) -> (i32, i32) {
    %c0_i32 = arith.constant 0 : i32
    %c0_i32_0 = arith.constant 0 : i32
    %c0_i32_1 = arith.constant 0 : i32
    return %c0_i32, %c0_i32_0 : i32, i32
  }
  func.func @transform_5(%arg0: i32) -> (i32, i32) {
    %c0_i32 = arith.constant 0 : i32
    %c0_i32_0 = arith.constant 0 : i32
    %c0_i32_1 = arith.constant 0 : i32
    return %c0_i32, %c0_i32_0 : i32, i32
  }
  func.func @transform_6(%arg0: i32) -> (i32, i32) {
    %c0_i32 = arith.constant 0 : i32
    %c0_i32_0 = arith.constant 0 : i32
    %c0_i32_1 = arith.constant 0 : i32
    return %c0_i32, %c0_i32_0 : i32, i32
  }
  func.func @transform_7(%arg0: i32) -> (i32, i32) {
    %c0_i32 = arith.constant 0 : i32
    %c0_i32_0 = arith.constant 0 : i32
    return %arg0, %c0_i32 : i32, i32
  }
}

</mosaic_0001>

<llo_original>
// kernel: tpu_custom_call.1
$region0: #{tpu_custom_call.1}
  #allocation0 [shape = 'u32[]', space=smem, size = 0x4, offset = 0x4, fixed_abs, tag = 'smem constant byte address 0x4 - core index']
  #allocation1 [shape = 'u32[144,128]{1,0:T(1,128)}', space=vmem, size = 0x12000, scoped, tag = 'internal scratch']
  %s0 = inlined_call_operand.hbm [shape: f32[8,140], index: 0, kind: input, shape index: {}]
  %s1 = inlined_call_operand.vmem [shape: bf16[140,80], index: 1, kind: input, shape index: {}]
  %s2 = inlined_call_operand.vmem [shape: f32[1,80], index: 2, kind: input, shape index: {}]
  %s3 = inlined_call_operand.vmem [shape: bf16[80,40], index: 3, kind: input, shape index: {}]
  %s4 = inlined_call_operand.vmem [shape: f32[1,40], index: 4, kind: input, shape index: {}]
  %s5 = inlined_call_operand.vmem [shape: bf16[40,10], index: 5, kind: input, shape index: {}]
  %s6 = inlined_call_operand.vmem [shape: f32[1,10], index: 6, kind: input, shape index: {}]
  %s7 = inlined_call_operand.hbm [shape: f32[8,10], index: 7, kind: output, shape index: {}]
  %s8 = sld [smem:[#allocation0]]
  $region42: #{tpu_custom_call.1} parent=0
    _
  %s10 = ssub.s32 1, %s8
  %s11 = scalar_select 0, %s10, %s8
  $region1: #{tpu_custom_call.1} parent=0
    #allocation2 [shape = 'u8[8192]{0}', space=vmem, size = 0x2000, scoped, tag = 'input window, operand 0, single buffered']
    #allocation3 [shape = 's32[1]{0}', space=sflag, size = 0x4, scoped, tag = 'scoped memory for tpu_custom_call.1']
    #allocation4 [shape = 's32[1]{0}', space=sflag, size = 0x4, scoped, tag = 'scoped memory for tpu_custom_call.1']
    #allocation5 [shape = 'u8[4096]{0}', space=vmem, size = 0x1000, scoped, tag = 'output window, operand 0, single buffered']
    %12 = vsyncpa [#allocation3], 0
    %13 = vsyncpa [#allocation4], 0
    // Predicated region
    $region2: #{tpu_custom_call.1} parent=1 // pred_check
      _
    $region3: #{tpu_custom_call.1} parent=1 // pred_check_branch
      %15 = sbr.rel (0) target = $region5
    $region4: #{tpu_custom_call.1} parent=1 // pred_region
      %s17 = ssub.s32 256, 256
      %18 = vsyncadd [#allocation3], %s17
      %s20 = sshll.u32 [#allocation2], 4
      %s21 = int_to_ptr.vmem [resolvable:$true] %s20
      %23 = dma.hbm_to_vmem [thread:$0]  %s0, 256, %s21, [#allocation3]
    $region5: #{tpu_custom_call.1} parent=1 // pred_fallthru
      _
    // Predicated region
    $region6: #{tpu_custom_call.1} parent=1 // pred_check
      _
    $region7: #{tpu_custom_call.1} parent=1 // pred_check_branch
      %25 = sbr.rel (0) target = $region9
    $region8: #{tpu_custom_call.1} parent=1 // pred_region
      _
    $region9: #{tpu_custom_call.1} parent=1 // pred_fallthru
      _
    // Predicated region
    $region10: #{tpu_custom_call.1} parent=1 // pred_check
      _
    $region11: #{tpu_custom_call.1} parent=1 // pred_check_branch
      %27 = sbr.rel (0) target = $region13
    $region12: #{tpu_custom_call.1} parent=1 // pred_region
      _
    $region13: #{tpu_custom_call.1} parent=1 // pred_fallthru
      _
    // Predicated region
    $region14: #{tpu_custom_call.1} parent=1 // pred_check
      _
    $region15: #{tpu_custom_call.1} parent=1 // pred_check_branch
      %29 = sbr.rel (0) target = $region17
    $region16: #{tpu_custom_call.1} parent=1 // pred_region
      _
    $region17: #{tpu_custom_call.1} parent=1 // pred_fallthru
      _
    // Predicated region
    $region18: #{tpu_custom_call.1} parent=1 // pred_check
      _
    $region19: #{tpu_custom_call.1} parent=1 // pred_check_branch
      %31 = sbr.rel (0) target = $region21
    $region20: #{tpu_custom_call.1} parent=1 // pred_region
      _
    $region21: #{tpu_custom_call.1} parent=1 // pred_fallthru
      _
    // Predicated region
    $region22: #{tpu_custom_call.1} parent=1 // pred_check
      _
    $region23: #{tpu_custom_call.1} parent=1 // pred_check_branch
      %33 = sbr.rel (0) target = $region25
    $region24: #{tpu_custom_call.1} parent=1 // pred_region
      _
    $region25: #{tpu_custom_call.1} parent=1 // pred_fallthru
      _
    // Predicated region
    $region26: #{tpu_custom_call.1} parent=1 // pred_check
      _
    $region27: #{tpu_custom_call.1} parent=1 // pred_check_branch
      %35 = sbr.rel (0) target = $region29
    $region28: #{tpu_custom_call.1} parent=1 // pred_region
      _
    $region29: #{tpu_custom_call.1} parent=1 // pred_fallthru
      _
    // Predicated region
    $region30: #{tpu_custom_call.1} parent=1 // pred_check
      _
    $region31: #{tpu_custom_call.1} parent=1 // pred_check_branch
      %37 = sbr.rel (0) target = $region33
    $region32: #{tpu_custom_call.1} parent=1 // pred_region
      %38 = dma.done [#allocation3], 256
    $region33: #{tpu_custom_call.1} parent=1 // pred_fallthru
      _
    %v40 = vld [vmem:[#allocation2] sm:$0xff]
    %v41 = vld [vmem:[#allocation2 + $0x8] sm:$0xff]
    %v42 = vpack.c.bf16 %v40, %v40
    %v43 = vpack.c.bf16 %v41, %v41
    %v44 = vld [vmem:[%s1] sm:$0xf]
    %v45 = vld [vmem:[%s1 + $0x4] sm:$0xf]
    %v46 = vld [vmem:[%s1 + $0x8] sm:$0xf]
    %v47 = vld [vmem:[%s1 + $0xc] sm:$0xf]
    %v48 = vld [vmem:[%s1 + $0x10] sm:$0xf]
    %v49 = vld [vmem:[%s1 + $0x14] sm:$0xf]
    %v50 = vld [vmem:[%s1 + $0x18] sm:$0xf]
    %v51 = vld [vmem:[%s1 + $0x1c] sm:$0xf]
    %v52 = vld [vmem:[%s1 + $0x20] sm:$0xf]
    %v53 = vld [vmem:[%s1 + $0x24] sm:$0xf]
    %v54 = vld [vmem:[%s1 + $0x28] sm:$0xf]
    %v55 = vld [vmem:[%s1 + $0x2c] sm:$0xf]
    %v56 = vld [vmem:[%s1 + $0x30] sm:$0xf]
    %v57 = vld [vmem:[%s1 + $0x34] sm:$0xf]
    %v58 = vld [vmem:[%s1 + $0x38] sm:$0xf]
    %v59 = vld [vmem:[%s1 + $0x3c] sm:$0xf]
    %v60 = vld [vmem:[%s1 + $0x40] sm:$0xf]
    %v61 = vld [vmem:[%s1 + $0x44] sm:$0x3]
    %v62 = vld [vmem:[%s2] sm:$0x1]
    %v64 = vlaneseq
    %v65 = vshrl.u32 %v64, 7
    %v66 = vsub.s32 0, %v65
    %v67 = vrot.slane %v62, %v66
    %v87 = vunpack.c.l.b16 %v44
    %v88 = vunpack.c.l.b16 %v45
    %v89 = vunpack.c.l.b16 %v46
    %v90 = vunpack.c.l.b16 %v47
    %v91 = vunpack.c.l.b16 %v48
    %v92 = vunpack.c.l.b16 %v49
    %v93 = vunpack.c.l.b16 %v50
    %v94 = vunpack.c.l.b16 %v51
    %v95 = vunpack.c.l.b16 %v52
    %v96 = vunpack.c.l.b16 %v53
    %v97 = vunpack.c.l.b16 %v54
    %v98 = vunpack.c.l.b16 %v55
    %v99 = vunpack.c.l.b16 %v56
    %v100 = vunpack.c.l.b16 %v57
    %v101 = vunpack.c.l.b16 %v58
    %v102 = vunpack.c.l.b16 %v59
    %v103 = vunpack.c.l.b16 %v60
    %v104 = vunpack.c.l.b16 %v61
    %v105 = vpack.c.b16 %v88, %v87
    %v106 = vpack.c.b16 %v90, %v89
    %v107 = vpack.c.b16 %v92, %v91
    %v108 = vpack.c.b16 %v94, %v93
    %v109 = vpack.c.b16 %v96, %v95
    %v110 = vpack.c.b16 %v98, %v97
    %v111 = vpack.c.b16 %v100, %v99
    %v112 = vpack.c.b16 %v102, %v101
    %v113 = vpack.c.b16 %v104, %v103
    %vm122 = vcmask 97280
    %v124 = vsel %vm122, %v43, 0
    %vm126 = vcmask 1045504
    %v128 = vsel %vm126, %v113, 0
    %130 = vmatprep.subr.bf16.mxu0 0
    %131 = vmatpush1.bf16.msra.mxu0 %v105
    %132 = vmatprep.subr.bf16.mxu0 0
    %133 = vmatpush1.bf16.msra.mxu0 %v106
    %134 = vmatprep.subr.bf16.mxu0 0
    %135 = vmatpush1.bf16.msra.mxu0 %v107
    %136 = vmatprep.subr.bf16.mxu0 0
    %137 = vmatpush1.bf16.msra.mxu0 %v108
    %138 = vmatprep.subr.bf16.mxu0 0
    %139 = vmatpush1.bf16.msra.mxu0 %v109
    %140 = vmatprep.subr.bf16.mxu0 0
    %141 = vmatpush1.bf16.msra.mxu0 %v110
    %142 = vmatprep.subr.bf16.mxu0 0
    %143 = vmatpush1.bf16.msra.mxu0 %v111
    %144 = vmatprep.subr.bf16.mxu0 0
    %145 = vmatpush1.bf16.msra.mxu0 %v112
    %146 = vmatprep.subr.bf16.mxu0 0
    %147 = vmatpush1.bf16.msra.mxu0 %v128
    %148 = vmatprep.subr.bf16.mxu0 0
    %149 = vmatpush1.bf16.msra.mxu0 0
    %150 = vmatprep.subr.bf16.mxu0 0
    %151 = vmatpush1.bf16.msra.mxu0 0
    %152 = vmatprep.subr.bf16.mxu0 0
    %153 = vmatpush1.bf16.msra.mxu0 0
    %154 = vmatprep.subr.bf16.mxu0 0
    %155 = vmatpush1.bf16.msra.mxu0 0
    %156 = vmatprep.subr.bf16.mxu0 0
    %157 = vmatpush1.bf16.msra.mxu0 0
    %158 = vmatprep.subr.bf16.mxu0 0
    %159 = vmatpush1.bf16.msra.mxu0 0
    %160 = vmatprep.subr.bf16.mxu0 0
    %161 = vmatpush1.bf16.msra.mxu0 0
    %162 = vmatprep.mubr.bf16.mxu0 %v124
    %163 = vmatmul.mubr.bf16.gmra.mrb[0].mxu0 %v42
    %v164 = vpop.f32.mrb[0].mxu0
    %v165 = vadd.f32 %v67, %v164
    %v166 = vpop.f32.mrb[0].mxu0
    %v167 = vpop.f32.mrb[0].mxu0
    %v168 = vpop.f32.mrb[0].mxu0
    %169 = vdwg.mxu0
    %v170 = vmax.f32 %v165, 0.0
    %v171 = vpack.c.bf16 %v170, %v170
    %v172 = vld [vmem:[%s3] sm:$0xf]
    %v173 = vld [vmem:[%s3 + $0x4] sm:$0xf]
    %v174 = vld [vmem:[%s3 + $0x8] sm:$0xf]
    %v175 = vld [vmem:[%s3 + $0xc] sm:$0xf]
    %v176 = vld [vmem:[%s3 + $0x10] sm:$0xf]
    %v177 = vld [vmem:[%s3 + $0x14] sm:$0xf]
    %v178 = vld [vmem:[%s3 + $0x18] sm:$0xf]
    %v179 = vld [vmem:[%s3 + $0x1c] sm:$0xf]
    %v180 = vld [vmem:[%s3 + $0x20] sm:$0xf]
    %v181 = vld [vmem:[%s3 + $0x24] sm:$0xf]
    %v182 = vld [vmem:[%s4] sm:$0x1]
    %v184 = vlaneseq
    %v185 = vshrl.u32 %v184, 7
    %v186 = vsub.s32 0, %v185
    %v187 = vrot.slane %v182, %v186
    %v199 = vunpack.c.l.b16 %v172
    %v200 = vunpack.c.l.b16 %v173
    %v201 = vunpack.c.l.b16 %v174
    %v202 = vunpack.c.l.b16 %v175
    %v203 = vunpack.c.l.b16 %v176
    %v204 = vunpack.c.l.b16 %v177
    %v205 = vunpack.c.l.b16 %v178
    %v206 = vunpack.c.l.b16 %v179
    %v207 = vunpack.c.l.b16 %v180
    %v208 = vunpack.c.l.b16 %v181
    %v209 = vpack.c.b16 %v200, %v199
    %v210 = vpack.c.b16 %v202, %v201
    %v211 = vpack.c.b16 %v204, %v203
    %v212 = vpack.c.b16 %v206, %v205
    %v213 = vpack.c.b16 %v208, %v207
    %vm219 = vcmask 654336
    %v221 = vsel %vm219, %v171, 0
    %223 = vmatprep.subr.bf16.mxu0 0
    %224 = vmatpush1.bf16.msra.mxu0 %v209
    %225 = vmatprep.subr.bf16.mxu0 0
    %226 = vmatpush1.bf16.msra.mxu0 %v210
    %227 = vmatprep.subr.bf16.mxu0 0
    %228 = vmatpush1.bf16.msra.mxu0 %v211
    %229 = vmatprep.subr.bf16.mxu0 0
    %230 = vmatpush1.bf16.msra.mxu0 %v212
    %231 = vmatprep.subr.bf16.mxu0 0
    %232 = vmatpush1.bf16.msra.mxu0 %v213
    %233 = vmatprep.subr.bf16.mxu0 0
    %234 = vmatpush1.bf16.msra.mxu0 0
    %235 = vmatprep.subr.bf16.mxu0 0
    %236 = vmatpush1.bf16.msra.mxu0 0
    %237 = vmatprep.subr.bf16.mxu0 0
    %238 = vmatpush1.bf16.msra.mxu0 0
    %239 = vmatprep.subr.bf16.mxu0 0
    %240 = vmatpush1.bf16.msra.mxu0 0
    %241 = vmatprep.subr.bf16.mxu0 0
    %242 = vmatpush1.bf16.msra.mxu0 0
    %243 = vmatprep.subr.bf16.mxu0 0
    %244 = vmatpush1.bf16.msra.mxu0 0
    %245 = vmatprep.subr.bf16.mxu0 0
    %246 = vmatpush1.bf16.msra.mxu0 0
    %247 = vmatprep.subr.bf16.mxu0 0
    %248 = vmatpush1.bf16.msra.mxu0 0
    %249 = vmatprep.subr.bf16.mxu0 0
    %250 = vmatpush1.bf16.msra.mxu0 0
    %251 = vmatprep.subr.bf16.mxu0 0
    %252 = vmatpush1.bf16.msra.mxu0 0
    %253 = vmatprep.subr.bf16.mxu0 0
    %254 = vmatpush1.bf16.msra.mxu0 0
    %255 = vmatprep.mubr.bf16.mxu0 0
    %256 = vmatmul.mubr.bf16.gmra.mrb[0].mxu0 %v221
    %v257 = vpop.f32.mrb[0].mxu0
    %v258 = vadd.f32 %v187, %v257
    %v259 = vpop.f32.mrb[0].mxu0
    %v260 = vpop.f32.mrb[0].mxu0
    %v261 = vpop.f32.mrb[0].mxu0
    %262 = vdwg.mxu0
    %v263 = vmax.f32 %v258, 0.0
    %v264 = vpack.c.bf16 %v263, %v263
    %v265 = vld [vmem:[%s5] sm:$0xf]
    %v266 = vld [vmem:[%s5 + $0x4] sm:$0xf]
    %v267 = vld [vmem:[%s5 + $0x8] sm:$0xf]
    %v268 = vld [vmem:[%s5 + $0xc] sm:$0xf]
    %v269 = vld [vmem:[%s5 + $0x10] sm:$0xf]
    %v270 = vld [vmem:[%s6] sm:$0x1]
    %v272 = vlaneseq
    %v273 = vshrl.u32 %v272, 7
    %v274 = vsub.s32 0, %v273
    %v275 = vrot.slane %v270, %v274
    %v282 = vunpack.c.l.b16 %v265
    %v283 = vunpack.c.l.b16 %v266
    %v284 = vunpack.c.l.b16 %v267
    %v285 = vunpack.c.l.b16 %v268
    %v286 = vunpack.c.l.b16 %v269
    %v287 = vpack.c.b16 %v283, %v282
    %v288 = vpack.c.b16 %v285, %v284
    %v289 = vpack.c.b16 %v286, %v286
    %vm292 = vcmask 326656
    %v294 = vsel %vm292, %v264, 0
    %vm296 = vcmask 1043456
    %v298 = vsel %vm296, %v289, 0
    %300 = vmatprep.subr.bf16.mxu0 0
    %301 = vmatpush1.bf16.msra.mxu0 %v287
    %302 = vmatprep.subr.bf16.mxu0 0
    %303 = vmatpush1.bf16.msra.mxu0 %v288
    %304 = vmatprep.subr.bf16.mxu0 0
    %305 = vmatpush1.bf16.msra.mxu0 %v298
    %306 = vmatprep.subr.bf16.mxu0 0
    %307 = vmatpush1.bf16.msra.mxu0 0
    %308 = vmatprep.subr.bf16.mxu0 0
    %309 = vmatpush1.bf16.msra.mxu0 0
    %310 = vmatprep.subr.bf16.mxu0 0
    %311 = vmatpush1.bf16.msra.mxu0 0
    %312 = vmatprep.subr.bf16.mxu0 0
    %313 = vmatpush1.bf16.msra.mxu0 0
    %314 = vmatprep.subr.bf16.mxu0 0
    %315 = vmatpush1.bf16.msra.mxu0 0
    %316 = vmatprep.subr.bf16.mxu0 0
    %317 = vmatpush1.bf16.msra.mxu0 0
    %318 = vmatprep.subr.bf16.mxu0 0
    %319 = vmatpush1.bf16.msra.mxu0 0
    %320 = vmatprep.subr.bf16.mxu0 0
    %321 = vmatpush1.bf16.msra.mxu0 0
    %322 = vmatprep.subr.bf16.mxu0 0
    %323 = vmatpush1.bf16.msra.mxu0 0
    %324 = vmatprep.subr.bf16.mxu0 0
    %325 = vmatpush1.bf16.msra.mxu0 0
    %326 = vmatprep.subr.bf16.mxu0 0
    %327 = vmatpush1.bf16.msra.mxu0 0
    %328 = vmatprep.subr.bf16.mxu0 0
    %329 = vmatpush1.bf16.msra.mxu0 0
    %330 = vmatprep.subr.bf16.mxu0 0
    %331 = vmatpush1.bf16.msra.mxu0 0
    %332 = vmatprep.mubr.bf16.mxu0 0
    %333 = vmatmul.mubr.bf16.gmra.mrb[0].mxu0 %v294
    %v334 = vpop.f32.mrb[0].mxu0
    %v335 = vadd.f32 %v275, %v334
    %v336 = vpop.f32.mrb[0].mxu0
    %v337 = vpop.f32.mrb[0].mxu0
    %v338 = vpop.f32.mrb[0].mxu0
    %339 = vdwg.mxu0
    %vm340 = vcmask 80896
    %v341 = vsel %vm340, %v335, -inf
    %342 = vmax.xlane.f32.xlu0 %v341
    %v343 = vpop.xlane.xlu0 %342
    %v344 = vsub.f32 %v335, %v343
    %v345 = vmul.f32 %v344, 1.442695
    %v346 = vpow.pop %v345
    %v347 = vsel %vm340, %v346, 0.0
    %348 = vadd.xlane.f32.xlu0 %v347
    %v349 = vpop.xlane.xlu0 %348
    %v350 = vlog2.pop %v349
    %v351 = vmul.f32 %v350, 0.6931472
    %v352 = vsub.f32 %v344, %v351
    %353 = vst.msk [vmem:[#allocation5] sm:$0xff] %vm340, %v352
    // Predicated region
    $region34: #{tpu_custom_call.1} parent=1 // pred_check
      _
    $region35: #{tpu_custom_call.1} parent=1 // pred_check_branch
      %355 = sbr.rel (0) target = $region37
    $region36: #{tpu_custom_call.1} parent=1 // pred_region
      %s357 = ssub.s32 128, 128
      %358 = vsyncadd [#allocation4], %s357
      %s360 = sshll.u32 [#allocation5], 4
      %s361 = int_to_ptr.vmem [resolvable:$true] %s360
      %363 = dma.vmem_to_hbm [thread:$0]  %s361, 128, %s7, [#allocation4]
    $region37: #{tpu_custom_call.1} parent=1 // pred_fallthru
      _
    // Predicated region
    $region38: #{tpu_custom_call.1} parent=1 // pred_check
      _
    $region39: #{tpu_custom_call.1} parent=1 // pred_check_branch
      %365 = sbr.rel (0) target = $region41
    $region40: #{tpu_custom_call.1} parent=1 // pred_region
      %366 = dma.done [#allocation4], 128
    $region41: #{tpu_custom_call.1} parent=1 // pred_fallthru
      _
    %367 = vsyncpa [#allocation3], 1
    %368 = vsyncpa [#allocation4], 1

</llo_original>
